<compile_context>
chip_gen: v5e
topology: v5e:2x2
jax: 0.10.0
libtpu: 0.0.40
codegen_flags: <defaults>
</compile_context>

<pallas_src>
import functools

import jax
import jax.numpy as jnp
from jax.experimental import pallas as pl
from jax.experimental.pallas import tpu as pltpu

FPAD = 128   # lane width: pad feature dims to this for lane-dense loads/stores
ROW = 8      # sublane tile: pad node counts to multiples of this


# ----------------------------- Pallas kernel -------------------------------
def hgnn_fused_kernel(x0_ref, x1_ref, ax1_ref, ax0_ref,
                      w1_ref, w2_ref, wh_ref, vec_ref, out_ref,
                      *, num_layer, n0p, n1p, n0, n1):
    f32 = jnp.float32
    bf16 = jnp.bfloat16

    # Zero-free split adjacency (rows = dst, cols = src), loaded once.
    ax1 = ax1_ref[...]          # (n1p + n0p, n1p) bf16 : rows [A001 ; A110]
    ax0 = ax0_ref[...]          # (n1p + n0p, n0p) bf16 : rows [A021 ; A030]

    x0 = x0_ref[...]            # (n0p, FPAD) f32, node type '0'
    x1 = x1_ref[...]            # (n1p, FPAD) f32, node type '1'

    # Row-validity masks for BatchNorm over padded node rows (true counts).
    mask0 = (jax.lax.broadcasted_iota(jnp.int32, (n0p, 1), 0) < n0).astype(f32)
    mask1 = (jax.lax.broadcasted_iota(jnp.int32, (n1p, 1), 0) < n1).astype(f32)
    inv_n0 = 1.0 / n0
    inv_n1 = 1.0 / n1

    for layer in range(num_layer):
        w1 = w1_ref[layer]              # (FPAD, FPAD) bf16
        w2 = w2_ref[layer]
        wh = wh_ref[layer]
        vecs = vec_ref[layer]           # (8, FPAD) f32 packed vectors
        b1, b2, bh = vecs[0:1], vecs[1:2], vecs[2:3]
        gamma, beta = vecs[3:4], vecs[4:5]

        # --- all four edge-type scatter-add aggregations as TWO zero-free
        #     MXU matmuls (one per source node type).
        agg_from_x1 = jnp.dot(ax1, x1.astype(bf16), preferred_element_type=f32)
        agg_from_x0 = jnp.dot(ax0, x0.astype(bf16), preferred_element_type=f32)
        agg001 = agg_from_x1[0:n1p]     # ('1','0','1')  dst '1' <- src '1'
        agg110 = agg_from_x1[n1p:]      # ('1','1','0')  dst '0' <- src '1'
        # agg_from_x0 is already the stacked [agg021 ; agg030].

        # --- GINConv (eps=0) on ('1','0','1'): nn(x_dst + sum(x_src)),
        #     nn = Linear -> ReLU -> Linear.
        gin_in = x1 + agg001
        hid = jnp.dot(gin_in.astype(bf16), w1, preferred_element_type=f32) + b1
        hid = jnp.maximum(hid, 0.0)
        gin_out = jnp.dot(hid.astype(bf16), w2, preferred_element_type=f32) + b2

        # --- shared `linears` module (coef=0.1) for the other three edge
        #     types; the x0-sourced pair runs as one stacked matmul.
        lin_x0 = (jnp.dot(agg_from_x0.astype(bf16), wh,
                          preferred_element_type=f32) + bh) * 0.1
        lin021 = lin_x0[0:n1p]          # dst '1' <- src '0'
        lin030 = lin_x0[n1p:]           # dst '0' <- src '0'
        lin110 = (jnp.dot(agg110.astype(bf16), wh,
                          preferred_element_type=f32) + bh) * 0.1

        # --- HeteroConv aggr='mean' (both contributing edge types present
        #     for each dst node type in this graph).
        h1 = 0.5 * (gin_out + lin021)
        h0 = 0.5 * (lin110 + lin030)

        # --- F.relu
        h0 = jnp.maximum(h0, 0.0)
        h1 = jnp.maximum(h1, 0.0)

        # --- BatchNorm1d (train mode): per-node-type batch stats (true node
        #     counts, padded rows masked), shared affine per layer.  One-pass
        #     stats -> the two row reductions are independent XLU work.
        def bn(h, mask, inv_n):
            hm = h * mask
            mean = jnp.sum(hm, axis=0, keepdims=True) * inv_n
            e2 = jnp.sum(hm * hm, axis=0, keepdims=True) * inv_n
            var = jnp.maximum(e2 - mean * mean, 0.0)
            scale = gamma * jax.lax.rsqrt(var + 1e-5)
            shift = beta - mean * scale
            # keep padded rows exactly zero so deeper layers stay clean
            return (h * scale + shift) * mask

        h0 = bn(h0, mask0, inv_n0)
        h1 = bn(h1, mask1, inv_n1)

        if layer + 1 < num_layer:
            x0, x1 = h0, h1             # VMEM/vreg-resident, no out_ref bounce
        else:
            out_ref[0:n0p, :] = h0      # node type '0' rows first
            out_ref[n0p:, :] = h1       # then node type '1'


# ----------------------------- wrapper --------------------------------------
def _round_up(n, m):
    return ((n + m - 1) // m) * m


def _pad2(a, rows, cols):
    out = jnp.zeros((rows, cols), a.dtype)
    return out.at[: a.shape[0], : a.shape[1]].set(a)


def build_split_adjacency(A001, A021, A110, A030, n0p, n1p):
    """Two zero-free block adjacencies so that
         [A001; A110] @ x1  -> [agg001 ; agg110]   (src node type '1')
         [A021; A030] @ x0  -> [agg021 ; agg030]   (src node type '0')
    Rows/cols zero-padded to sublane-aligned node counts."""
    a_x1 = jnp.concatenate([_pad2(A001, n1p, n1p),
                            _pad2(A110, n0p, n1p)], axis=0)
    a_x0 = jnp.concatenate([_pad2(A021, n1p, n0p),
                            _pad2(A030, n0p, n0p)], axis=0)
    # Edge multiplicities are small integers -> exact in bf16 (< 256).
    return a_x1.astype(jnp.bfloat16), a_x0.astype(jnp.bfloat16)


def pack_params(layer_params):
    """Stack per-layer weights (zero-padded to FPADxFPAD, bf16) and pack the
    tiny (1, E) vectors into one (8, FPAD) f32 block per layer."""
    w1s, w2s, whs, vecs = [], [], [], []
    for (W1, b1, W2, b2, Wh, bh, gamma, beta) in layer_params:
        emb = W2.shape[1]
        w1s.append(_pad2(W1, FPAD, FPAD))
        w2s.append(_pad2(W2, FPAD, FPAD))
        whs.append(_pad2(Wh, FPAD, FPAD))
        v = jnp.zeros((8, FPAD), jnp.float32)
        v = v.at[0, :emb].set(b1.reshape(-1))
        v = v.at[1, :emb].set(b2.reshape(-1))
        v = v.at[2, :emb].set(bh.reshape(-1))
        v = v.at[3, :emb].set(gamma.reshape(-1))   # padded cols 0 -> stay 0
        v = v.at[4, :emb].set(beta.reshape(-1))
        vecs.append(v)
    return (jnp.stack(w1s).astype(jnp.bfloat16),
            jnp.stack(w2s).astype(jnp.bfloat16),
            jnp.stack(whs).astype(jnp.bfloat16),
            jnp.stack(vecs))


@jax.jit
def hgnn_forward(x0, x1, adjs, layer_params):
    # JK == 'last': only the last layer's h_dict is used.
    N0, N1 = x0.shape[0], x1.shape[0]
    emb_dim = layer_params[0][2].shape[1]            # W2 is (emb, emb)
    num_layer = len(layer_params)
    N0p, N1p = _round_up(N0, ROW), _round_up(N1, ROW)

    x0p = _pad2(x0.astype(jnp.float32), N0p, FPAD)
    x1p = _pad2(x1.astype(jnp.float32), N1p, FPAD)
    a_x1, a_x0 = build_split_adjacency(*adjs, n0p=N0p, n1p=N1p)
    w1_all, w2_all, wh_all, vec_all = pack_params(layer_params)

    operands = (x0p, x1p, a_x1, a_x0, w1_all, w2_all, wh_all, vec_all)
    need = sum(int(a.size) * a.dtype.itemsize for a in operands)
    need += (N0p + N1p) * FPAD * 4                   # output slab
    vmem_limit = int(min(max(2 * need + (1 << 20), 4 << 20), 48 << 20))

    kernel = functools.partial(hgnn_fused_kernel, num_layer=num_layer,
                               n0p=N0p, n1p=N1p, n0=N0, n1=N1)
    # Grid-less call: single invocation, full arrays in VMEM, single-buffered.
    out = pl.pallas_call(
        kernel,
        out_shape=jax.ShapeDtypeStruct((N0p + N1p, FPAD), jnp.float32),
        compiler_params=pltpu.CompilerParams(vmem_limit_bytes=vmem_limit),
    )(*operands)

    # batch.to_homogeneous().x : node type '0' features then node type '1'.
    if N0p == N0:
        return out[: N0 + N1, :emb_dim]
    return jnp.concatenate(
        [out[:N0, :emb_dim], out[N0p:N0p + N1, :emb_dim]], axis=0)


# ----------------------------- parameter / input setup ----------------------
def dense_adj(key, n_dst, n_src, n_edges):
    """Dense adjacency A[dst, src] from random edge_index (test glue)."""
    k1, k2 = jax.random.split(key)
    src = jax.random.randint(k1, (n_edges,), 0, n_src)
    dst = jax.random.randint(k2, (n_edges,), 0, n_dst)
    A = jnp.zeros((n_dst, n_src), jnp.float32)
    return A.at[dst, src].add(1.0)


def make_layer_params(key, in_dim, emb_dim):
    ks = jax.random.split(key, 6)
    scale = 0.1
    W1 = jax.random.normal(ks[0], (in_dim, emb_dim), jnp.float32) * scale
    b1 = jax.random.normal(ks[1], (1, emb_dim), jnp.float32) * scale
    W2 = jax.random.normal(ks[2], (emb_dim, emb_dim), jnp.float32) * scale
    b2 = jax.random.normal(ks[3], (1, emb_dim), jnp.float32) * scale
    Wh = jax.random.normal(ks[4], (in_dim, emb_dim), jnp.float32) * scale
    bh = jax.random.normal(ks[5], (1, emb_dim), jnp.float32) * scale
    gamma = jnp.ones((1, emb_dim), jnp.float32)   # BatchNorm1d default affine
    beta = jnp.zeros((1, emb_dim), jnp.float32)
    return (W1, b1, W2, b2, Wh, bh, gamma, beta)


if __name__ == "__main__":
    # Small shapes consistent with the module: num_layer=2, emb_dim=32,
    # seq_len=8 (initial node feature dim), N0=N1=16 nodes per type.
    num_layer, emb_dim, seq_len = 2, 32, 8
    N0, N1, n_edges = 16, 16, 32

    root = jax.random.PRNGKey(0)
    k_x0, k_x1, k_e1, k_e2, k_e3, k_e4, k_p0, k_p1 = jax.random.split(root, 8)

    x0 = jax.random.normal(k_x0, (N0, seq_len), jnp.float32)   # node type '0'
    x1 = jax.random.normal(k_x1, (N1, seq_len), jnp.float32)   # node type '1'

    adjs = (
        dense_adj(k_e1, N1, N1, n_edges),   # ('1','0','1')  dst '1' <- src '1'
        dense_adj(k_e2, N1, N0, n_edges),   # ('0','2','1')  dst '1' <- src '0'
        dense_adj(k_e3, N0, N1, n_edges),   # ('1','1','0')  dst '0' <- src '1'
        dense_adj(k_e4, N0, N0, n_edges),   # ('0','3','0')  dst '0' <- src '0'
    )
    # bf16 adjacency is exact only while edge multiplicities stay < 256.
    assert all(float(jnp.max(A)) < 256.0 for A in adjs)

    layer_params = (
        make_layer_params(k_p0, seq_len, emb_dim),   # layer 0: in_dim = seq_len
        make_layer_params(k_p1, emb_dim, emb_dim),   # layer 1+: in_dim = emb_dim
    )

    out = hgnn_forward(x0, x1, adjs, layer_params)
    out = jax.block_until_ready(out)
    assert out.shape == (N0 + N1, emb_dim), out.shape
    assert jnp.all(jnp.isfinite(out))
    print("KERNEL_OK")
</pallas_src>

<mosaic_0001>
module attributes {stable_mosaic.version = 11 : i64} {
  func.func @hgnn_fused_kernel(%arg0: memref<16x128xf32, #tpu.memory_space<vmem>>, %arg1: memref<16x128xf32, #tpu.memory_space<vmem>>, %arg2: memref<32x16xbf16, #tpu.memory_space<vmem>>, %arg3: memref<32x16xbf16, #tpu.memory_space<vmem>>, %arg4: memref<2x128x128xbf16, #tpu.memory_space<vmem>>, %arg5: memref<2x128x128xbf16, #tpu.memory_space<vmem>>, %arg6: memref<2x128x128xbf16, #tpu.memory_space<vmem>>, %arg7: memref<2x8x128xf32, #tpu.memory_space<vmem>>, %arg8: memref<32x128xf32, #tpu.memory_space<vmem>>) attributes {dimension_semantics = [], scalar_prefetch = 0 : i64, scratch_operands = 0 : i64, tpu.core_type = #tpu.core_type<tc>} {
    %c0 = arith.constant 0 : index
    %c0_0 = arith.constant 0 : index
    %0 = vector.load %arg2[%c0, %c0_0] : memref<32x16xbf16, #tpu.memory_space<vmem>>, vector<32x16xbf16>
    %c0_1 = arith.constant 0 : index
    %c0_2 = arith.constant 0 : index
    %1 = vector.load %arg3[%c0_1, %c0_2] : memref<32x16xbf16, #tpu.memory_space<vmem>>, vector<32x16xbf16>
    %c0_3 = arith.constant 0 : index
    %c0_4 = arith.constant 0 : index
    %2 = vector.load %arg0[%c0_3, %c0_4] : memref<16x128xf32, #tpu.memory_space<vmem>>, vector<16x128xf32>
    %c0_5 = arith.constant 0 : index
    %c0_6 = arith.constant 0 : index
    %3 = vector.load %arg1[%c0_5, %c0_6] : memref<16x128xf32, #tpu.memory_space<vmem>>, vector<16x128xf32>
    %4 = tpu.iota {dimensions = array<i32: 0>} : vector<16x1xi32>
    %c16_i32 = arith.constant 16 : i32
    %5 = vector.broadcast %c16_i32 : i32 to vector<16x1xi32>
    %6 = arith.cmpi slt, %4, %5 : vector<16x1xi32>
    %7 = arith.extui %6 : vector<16x1xi1> to vector<16x1xi32>
    %8 = arith.sitofp %7 : vector<16x1xi32> to vector<16x1xf32>
    %9 = tpu.iota {dimensions = array<i32: 0>} : vector<16x1xi32>
    %c16_i32_7 = arith.constant 16 : i32
    %10 = vector.broadcast %c16_i32_7 : i32 to vector<16x1xi32>
    %11 = arith.cmpi slt, %9, %10 : vector<16x1xi32>
    %12 = arith.extui %11 : vector<16x1xi1> to vector<16x1xi32>
    %13 = arith.sitofp %12 : vector<16x1xi32> to vector<16x1xf32>
    %c0_8 = arith.constant 0 : index
    %c0_9 = arith.constant 0 : index
    %c0_10 = arith.constant 0 : index
    %14 = vector.load %arg4[%c0_8, %c0_9, %c0_10] : memref<2x128x128xbf16, #tpu.memory_space<vmem>>, vector<1x128x128xbf16>
    %15 = vector.shape_cast %14 : vector<1x128x128xbf16> to vector<128x128xbf16>
    %c0_11 = arith.constant 0 : index
    %c0_12 = arith.constant 0 : index
    %c0_13 = arith.constant 0 : index
    %16 = vector.load %arg5[%c0_11, %c0_12, %c0_13] : memref<2x128x128xbf16, #tpu.memory_space<vmem>>, vector<1x128x128xbf16>
    %17 = vector.shape_cast %16 : vector<1x128x128xbf16> to vector<128x128xbf16>
    %c0_14 = arith.constant 0 : index
    %c0_15 = arith.constant 0 : index
    %c0_16 = arith.constant 0 : index
    %18 = vector.load %arg6[%c0_14, %c0_15, %c0_16] : memref<2x128x128xbf16, #tpu.memory_space<vmem>>, vector<1x128x128xbf16>
    %19 = vector.shape_cast %18 : vector<1x128x128xbf16> to vector<128x128xbf16>
    %c0_17 = arith.constant 0 : index
    %c0_18 = arith.constant 0 : index
    %c0_19 = arith.constant 0 : index
    %20 = vector.load %arg7[%c0_17, %c0_18, %c0_19] : memref<2x8x128xf32, #tpu.memory_space<vmem>>, vector<1x8x128xf32>
    %21 = vector.shape_cast %20 : vector<1x8x128xf32> to vector<8x128xf32>
    %22 = vector.extract_strided_slice %21 {offsets = [0, 0], sizes = [1, 128], strides = [1, 1]} : vector<8x128xf32> to vector<1x128xf32>
    %23 = vector.extract_strided_slice %21 {offsets = [1, 0], sizes = [1, 128], strides = [1, 1]} : vector<8x128xf32> to vector<1x128xf32>
    %24 = vector.extract_strided_slice %21 {offsets = [2, 0], sizes = [1, 128], strides = [1, 1]} : vector<8x128xf32> to vector<1x128xf32>
    %25 = vector.extract_strided_slice %21 {offsets = [3, 0], sizes = [1, 128], strides = [1, 1]} : vector<8x128xf32> to vector<1x128xf32>
    %26 = vector.extract_strided_slice %21 {offsets = [4, 0], sizes = [1, 128], strides = [1, 1]} : vector<8x128xf32> to vector<1x128xf32>
    %27 = arith.truncf %3 : vector<16x128xf32> to vector<16x128xbf16>
    %cst = arith.constant dense<0.000000e+00> : vector<32x128xf32>
    %28 = tpu.matmul %0, %27, %cst {dimension_numbers = #tpu.dot_dimension_numbers<[1], [0], [0], [1], [0, 0, 1, 1], [], []>} : vector<32x16xbf16>, vector<16x128xbf16>, vector<32x128xf32> -> vector<32x128xf32>
    %29 = arith.truncf %2 : vector<16x128xf32> to vector<16x128xbf16>
    %cst_20 = arith.constant dense<0.000000e+00> : vector<32x128xf32>
    %30 = tpu.matmul %1, %29, %cst_20 {dimension_numbers = #tpu.dot_dimension_numbers<[1], [0], [0], [1], [0, 0, 1, 1], [], []>} : vector<32x16xbf16>, vector<16x128xbf16>, vector<32x128xf32> -> vector<32x128xf32>
    %31 = vector.extract_strided_slice %28 {offsets = [0, 0], sizes = [16, 128], strides = [1, 1]} : vector<32x128xf32> to vector<16x128xf32>
    %32 = vector.extract_strided_slice %28 {offsets = [16, 0], sizes = [16, 128], strides = [1, 1]} : vector<32x128xf32> to vector<16x128xf32>
    %33 = arith.addf %3, %31 : vector<16x128xf32>
    %34 = arith.truncf %33 : vector<16x128xf32> to vector<16x128xbf16>
    %cst_21 = arith.constant dense<0.000000e+00> : vector<16x128xf32>
    %35 = tpu.matmul %34, %15, %cst_21 {dimension_numbers = #tpu.dot_dimension_numbers<[1], [0], [0], [1], [0, 0, 1, 1], [], []>} : vector<16x128xbf16>, vector<128x128xbf16>, vector<16x128xf32> -> vector<16x128xf32>
    %36 = vector.broadcast %22 : vector<1x128xf32> to vector<16x128xf32>
    %37 = arith.addf %35, %36 : vector<16x128xf32>
    %cst_22 = arith.constant 0.000000e+00 : f32
    %38 = vector.broadcast %cst_22 : f32 to vector<16x128xf32>
    %39 = arith.maximumf %37, %38 : vector<16x128xf32>
    %40 = arith.truncf %39 : vector<16x128xf32> to vector<16x128xbf16>
    %cst_23 = arith.constant dense<0.000000e+00> : vector<16x128xf32>
    %41 = tpu.matmul %40, %17, %cst_23 {dimension_numbers = #tpu.dot_dimension_numbers<[1], [0], [0], [1], [0, 0, 1, 1], [], []>} : vector<16x128xbf16>, vector<128x128xbf16>, vector<16x128xf32> -> vector<16x128xf32>
    %42 = vector.broadcast %23 : vector<1x128xf32> to vector<16x128xf32>
    %43 = arith.addf %41, %42 : vector<16x128xf32>
    %44 = arith.truncf %30 : vector<32x128xf32> to vector<32x128xbf16>
    %cst_24 = arith.constant dense<0.000000e+00> : vector<32x128xf32>
    %45 = tpu.matmul %44, %19, %cst_24 {dimension_numbers = #tpu.dot_dimension_numbers<[1], [0], [0], [1], [0, 0, 1, 1], [], []>} : vector<32x128xbf16>, vector<128x128xbf16>, vector<32x128xf32> -> vector<32x128xf32>
    %46 = vector.broadcast %24 : vector<1x128xf32> to vector<32x128xf32>
    %47 = arith.addf %45, %46 : vector<32x128xf32>
    %cst_25 = arith.constant 1.000000e-01 : f32
    %48 = vector.broadcast %cst_25 : f32 to vector<32x128xf32>
    %49 = arith.mulf %47, %48 : vector<32x128xf32>
    %50 = vector.extract_strided_slice %49 {offsets = [0, 0], sizes = [16, 128], strides = [1, 1]} : vector<32x128xf32> to vector<16x128xf32>
    %51 = vector.extract_strided_slice %49 {offsets = [16, 0], sizes = [16, 128], strides = [1, 1]} : vector<32x128xf32> to vector<16x128xf32>
    %52 = arith.truncf %32 : vector<16x128xf32> to vector<16x128xbf16>
    %cst_26 = arith.constant dense<0.000000e+00> : vector<16x128xf32>
    %53 = tpu.matmul %52, %19, %cst_26 {dimension_numbers = #tpu.dot_dimension_numbers<[1], [0], [0], [1], [0, 0, 1, 1], [], []>} : vector<16x128xbf16>, vector<128x128xbf16>, vector<16x128xf32> -> vector<16x128xf32>
    %54 = vector.broadcast %24 : vector<1x128xf32> to vector<16x128xf32>
    %55 = arith.addf %53, %54 : vector<16x128xf32>
    %cst_27 = arith.constant 1.000000e-01 : f32
    %56 = vector.broadcast %cst_27 : f32 to vector<16x128xf32>
    %57 = arith.mulf %55, %56 : vector<16x128xf32>
    %58 = arith.addf %43, %50 : vector<16x128xf32>
    %cst_28 = arith.constant 5.000000e-01 : f32
    %59 = vector.broadcast %cst_28 : f32 to vector<16x128xf32>
    %60 = arith.mulf %59, %58 : vector<16x128xf32>
    %61 = arith.addf %57, %51 : vector<16x128xf32>
    %cst_29 = arith.constant 5.000000e-01 : f32
    %62 = vector.broadcast %cst_29 : f32 to vector<16x128xf32>
    %63 = arith.mulf %62, %61 : vector<16x128xf32>
    %cst_30 = arith.constant 0.000000e+00 : f32
    %64 = vector.broadcast %cst_30 : f32 to vector<16x128xf32>
    %65 = arith.maximumf %63, %64 : vector<16x128xf32>
    %cst_31 = arith.constant 0.000000e+00 : f32
    %66 = vector.broadcast %cst_31 : f32 to vector<16x128xf32>
    %67 = arith.maximumf %60, %66 : vector<16x128xf32>
    %68 = vector.broadcast %8 : vector<16x1xf32> to vector<16x128xf32>
    %69 = arith.mulf %65, %68 : vector<16x128xf32>
    %cst_32 = arith.constant dense<0.000000e+00> : vector<128xf32>
    %70 = vector.multi_reduction <add>, %69, %cst_32 [0] : vector<16x128xf32> to vector<128xf32>
    %71 = vector.shape_cast %70 : vector<128xf32> to vector<1x128xf32>
    %cst_33 = arith.constant 6.250000e-02 : f32
    %72 = vector.broadcast %cst_33 : f32 to vector<1x128xf32>
    %73 = arith.mulf %71, %72 : vector<1x128xf32>
    %74 = arith.mulf %69, %69 : vector<16x128xf32>
    %cst_34 = arith.constant dense<0.000000e+00> : vector<128xf32>
    %75 = vector.multi_reduction <add>, %74, %cst_34 [0] : vector<16x128xf32> to vector<128xf32>
    %76 = vector.shape_cast %75 : vector<128xf32> to vector<1x128xf32>
    %cst_35 = arith.constant 6.250000e-02 : f32
    %77 = vector.broadcast %cst_35 : f32 to vector<1x128xf32>
    %78 = arith.mulf %76, %77 : vector<1x128xf32>
    %79 = arith.mulf %73, %73 : vector<1x128xf32>
    %80 = arith.subf %78, %79 : vector<1x128xf32>
    %cst_36 = arith.constant 0.000000e+00 : f32
    %81 = vector.broadcast %cst_36 : f32 to vector<1x128xf32>
    %82 = arith.maximumf %80, %81 : vector<1x128xf32>
    %cst_37 = arith.constant 9.99999974E-6 : f32
    %83 = vector.broadcast %cst_37 : f32 to vector<1x128xf32>
    %84 = arith.addf %82, %83 : vector<1x128xf32>
    %85 = math.rsqrt %84 : vector<1x128xf32>
    %86 = arith.mulf %25, %85 : vector<1x128xf32>
    %87 = arith.mulf %73, %86 : vector<1x128xf32>
    %88 = arith.subf %26, %87 : vector<1x128xf32>
    %89 = vector.broadcast %86 : vector<1x128xf32> to vector<16x128xf32>
    %90 = arith.mulf %65, %89 : vector<16x128xf32>
    %91 = vector.broadcast %88 : vector<1x128xf32> to vector<16x128xf32>
    %92 = arith.addf %90, %91 : vector<16x128xf32>
    %93 = vector.broadcast %8 : vector<16x1xf32> to vector<16x128xf32>
    %94 = arith.mulf %92, %93 : vector<16x128xf32>
    %95 = vector.broadcast %13 : vector<16x1xf32> to vector<16x128xf32>
    %96 = arith.mulf %67, %95 : vector<16x128xf32>
    %cst_38 = arith.constant dense<0.000000e+00> : vector<128xf32>
    %97 = vector.multi_reduction <add>, %96, %cst_38 [0] : vector<16x128xf32> to vector<128xf32>
    %98 = vector.shape_cast %97 : vector<128xf32> to vector<1x128xf32>
    %cst_39 = arith.constant 6.250000e-02 : f32
    %99 = vector.broadcast %cst_39 : f32 to vector<1x128xf32>
    %100 = arith.mulf %98, %99 : vector<1x128xf32>
    %101 = arith.mulf %96, %96 : vector<16x128xf32>
    %cst_40 = arith.constant dense<0.000000e+00> : vector<128xf32>
    %102 = vector.multi_reduction <add>, %101, %cst_40 [0] : vector<16x128xf32> to vector<128xf32>
    %103 = vector.shape_cast %102 : vector<128xf32> to vector<1x128xf32>
    %cst_41 = arith.constant 6.250000e-02 : f32
    %104 = vector.broadcast %cst_41 : f32 to vector<1x128xf32>
    %105 = arith.mulf %103, %104 : vector<1x128xf32>
    %106 = arith.mulf %100, %100 : vector<1x128xf32>
    %107 = arith.subf %105, %106 : vector<1x128xf32>
    %cst_42 = arith.constant 0.000000e+00 : f32
    %108 = vector.broadcast %cst_42 : f32 to vector<1x128xf32>
    %109 = arith.maximumf %107, %108 : vector<1x128xf32>
    %cst_43 = arith.constant 9.99999974E-6 : f32
    %110 = vector.broadcast %cst_43 : f32 to vector<1x128xf32>
    %111 = arith.addf %109, %110 : vector<1x128xf32>
    %112 = math.rsqrt %111 : vector<1x128xf32>
    %113 = arith.mulf %25, %112 : vector<1x128xf32>
    %114 = arith.mulf %100, %113 : vector<1x128xf32>
    %115 = arith.subf %26, %114 : vector<1x128xf32>
    %116 = vector.broadcast %113 : vector<1x128xf32> to vector<16x128xf32>
    %117 = arith.mulf %67, %116 : vector<16x128xf32>
    %118 = vector.broadcast %115 : vector<1x128xf32> to vector<16x128xf32>
    %119 = arith.addf %117, %118 : vector<16x128xf32>
    %120 = vector.broadcast %13 : vector<16x1xf32> to vector<16x128xf32>
    %121 = arith.mulf %119, %120 : vector<16x128xf32>
    %c1 = arith.constant 1 : index
    %c0_44 = arith.constant 0 : index
    %c0_45 = arith.constant 0 : index
    %122 = vector.load %arg4[%c1, %c0_44, %c0_45] : memref<2x128x128xbf16, #tpu.memory_space<vmem>>, vector<1x128x128xbf16>
    %123 = vector.shape_cast %122 : vector<1x128x128xbf16> to vector<128x128xbf16>
    %c1_46 = arith.constant 1 : index
    %c0_47 = arith.constant 0 : index
    %c0_48 = arith.constant 0 : index
    %124 = vector.load %arg5[%c1_46, %c0_47, %c0_48] : memref<2x128x128xbf16, #tpu.memory_space<vmem>>, vector<1x128x128xbf16>
    %125 = vector.shape_cast %124 : vector<1x128x128xbf16> to vector<128x128xbf16>
    %c1_49 = arith.constant 1 : index
    %c0_50 = arith.constant 0 : index
    %c0_51 = arith.constant 0 : index
    %126 = vector.load %arg6[%c1_49, %c0_50, %c0_51] : memref<2x128x128xbf16, #tpu.memory_space<vmem>>, vector<1x128x128xbf16>
    %127 = vector.shape_cast %126 : vector<1x128x128xbf16> to vector<128x128xbf16>
    %c1_52 = arith.constant 1 : index
    %c0_53 = arith.constant 0 : index
    %c0_54 = arith.constant 0 : index
    %128 = vector.load %arg7[%c1_52, %c0_53, %c0_54] : memref<2x8x128xf32, #tpu.memory_space<vmem>>, vector<1x8x128xf32>
    %129 = vector.shape_cast %128 : vector<1x8x128xf32> to vector<8x128xf32>
    %130 = vector.extract_strided_slice %129 {offsets = [0, 0], sizes = [1, 128], strides = [1, 1]} : vector<8x128xf32> to vector<1x128xf32>
    %131 = vector.extract_strided_slice %129 {offsets = [1, 0], sizes = [1, 128], strides = [1, 1]} : vector<8x128xf32> to vector<1x128xf32>
    %132 = vector.extract_strided_slice %129 {offsets = [2, 0], sizes = [1, 128], strides = [1, 1]} : vector<8x128xf32> to vector<1x128xf32>
    %133 = vector.extract_strided_slice %129 {offsets = [3, 0], sizes = [1, 128], strides = [1, 1]} : vector<8x128xf32> to vector<1x128xf32>
    %134 = vector.extract_strided_slice %129 {offsets = [4, 0], sizes = [1, 128], strides = [1, 1]} : vector<8x128xf32> to vector<1x128xf32>
    %135 = arith.truncf %121 : vector<16x128xf32> to vector<16x128xbf16>
    %cst_55 = arith.constant dense<0.000000e+00> : vector<32x128xf32>
    %136 = tpu.matmul %0, %135, %cst_55 {dimension_numbers = #tpu.dot_dimension_numbers<[1], [0], [0], [1], [0, 0, 1, 1], [], []>} : vector<32x16xbf16>, vector<16x128xbf16>, vector<32x128xf32> -> vector<32x128xf32>
    %137 = arith.truncf %94 : vector<16x128xf32> to vector<16x128xbf16>
    %cst_56 = arith.constant dense<0.000000e+00> : vector<32x128xf32>
    %138 = tpu.matmul %1, %137, %cst_56 {dimension_numbers = #tpu.dot_dimension_numbers<[1], [0], [0], [1], [0, 0, 1, 1], [], []>} : vector<32x16xbf16>, vector<16x128xbf16>, vector<32x128xf32> -> vector<32x128xf32>
    %139 = vector.extract_strided_slice %136 {offsets = [0, 0], sizes = [16, 128], strides = [1, 1]} : vector<32x128xf32> to vector<16x128xf32>
    %140 = vector.extract_strided_slice %136 {offsets = [16, 0], sizes = [16, 128], strides = [1, 1]} : vector<32x128xf32> to vector<16x128xf32>
    %141 = arith.addf %121, %139 : vector<16x128xf32>
    %142 = arith.truncf %141 : vector<16x128xf32> to vector<16x128xbf16>
    %cst_57 = arith.constant dense<0.000000e+00> : vector<16x128xf32>
    %143 = tpu.matmul %142, %123, %cst_57 {dimension_numbers = #tpu.dot_dimension_numbers<[1], [0], [0], [1], [0, 0, 1, 1], [], []>} : vector<16x128xbf16>, vector<128x128xbf16>, vector<16x128xf32> -> vector<16x128xf32>
    %144 = vector.broadcast %130 : vector<1x128xf32> to vector<16x128xf32>
    %145 = arith.addf %143, %144 : vector<16x128xf32>
    %cst_58 = arith.constant 0.000000e+00 : f32
    %146 = vector.broadcast %cst_58 : f32 to vector<16x128xf32>
    %147 = arith.maximumf %145, %146 : vector<16x128xf32>
    %148 = arith.truncf %147 : vector<16x128xf32> to vector<16x128xbf16>
    %cst_59 = arith.constant dense<0.000000e+00> : vector<16x128xf32>
    %149 = tpu.matmul %148, %125, %cst_59 {dimension_numbers = #tpu.dot_dimension_numbers<[1], [0], [0], [1], [0, 0, 1, 1], [], []>} : vector<16x128xbf16>, vector<128x128xbf16>, vector<16x128xf32> -> vector<16x128xf32>
    %150 = vector.broadcast %131 : vector<1x128xf32> to vector<16x128xf32>
    %151 = arith.addf %149, %150 : vector<16x128xf32>
    %152 = arith.truncf %138 : vector<32x128xf32> to vector<32x128xbf16>
    %cst_60 = arith.constant dense<0.000000e+00> : vector<32x128xf32>
    %153 = tpu.matmul %152, %127, %cst_60 {dimension_numbers = #tpu.dot_dimension_numbers<[1], [0], [0], [1], [0, 0, 1, 1], [], []>} : vector<32x128xbf16>, vector<128x128xbf16>, vector<32x128xf32> -> vector<32x128xf32>
    %154 = vector.broadcast %132 : vector<1x128xf32> to vector<32x128xf32>
    %155 = arith.addf %153, %154 : vector<32x128xf32>
    %cst_61 = arith.constant 1.000000e-01 : f32
    %156 = vector.broadcast %cst_61 : f32 to vector<32x128xf32>
    %157 = arith.mulf %155, %156 : vector<32x128xf32>
    %158 = vector.extract_strided_slice %157 {offsets = [0, 0], sizes = [16, 128], strides = [1, 1]} : vector<32x128xf32> to vector<16x128xf32>
    %159 = vector.extract_strided_slice %157 {offsets = [16, 0], sizes = [16, 128], strides = [1, 1]} : vector<32x128xf32> to vector<16x128xf32>
    %160 = arith.truncf %140 : vector<16x128xf32> to vector<16x128xbf16>
    %cst_62 = arith.constant dense<0.000000e+00> : vector<16x128xf32>
    %161 = tpu.matmul %160, %127, %cst_62 {dimension_numbers = #tpu.dot_dimension_numbers<[1], [0], [0], [1], [0, 0, 1, 1], [], []>} : vector<16x128xbf16>, vector<128x128xbf16>, vector<16x128xf32> -> vector<16x128xf32>
    %162 = vector.broadcast %132 : vector<1x128xf32> to vector<16x128xf32>
    %163 = arith.addf %161, %162 : vector<16x128xf32>
    %cst_63 = arith.constant 1.000000e-01 : f32
    %164 = vector.broadcast %cst_63 : f32 to vector<16x128xf32>
    %165 = arith.mulf %163, %164 : vector<16x128xf32>
    %166 = arith.addf %151, %158 : vector<16x128xf32>
    %cst_64 = arith.constant 5.000000e-01 : f32
    %167 = vector.broadcast %cst_64 : f32 to vector<16x128xf32>
    %168 = arith.mulf %167, %166 : vector<16x128xf32>
    %169 = arith.addf %165, %159 : vector<16x128xf32>
    %cst_65 = arith.constant 5.000000e-01 : f32
    %170 = vector.broadcast %cst_65 : f32 to vector<16x128xf32>
    %171 = arith.mulf %170, %169 : vector<16x128xf32>
    %cst_66 = arith.constant 0.000000e+00 : f32
    %172 = vector.broadcast %cst_66 : f32 to vector<16x128xf32>
    %173 = arith.maximumf %171, %172 : vector<16x128xf32>
    %cst_67 = arith.constant 0.000000e+00 : f32
    %174 = vector.broadcast %cst_67 : f32 to vector<16x128xf32>
    %175 = arith.maximumf %168, %174 : vector<16x128xf32>
    %176 = vector.broadcast %8 : vector<16x1xf32> to vector<16x128xf32>
    %177 = arith.mulf %173, %176 : vector<16x128xf32>
    %cst_68 = arith.constant dense<0.000000e+00> : vector<128xf32>
    %178 = vector.multi_reduction <add>, %177, %cst_68 [0] : vector<16x128xf32> to vector<128xf32>
    %179 = vector.shape_cast %178 : vector<128xf32> to vector<1x128xf32>
    %cst_69 = arith.constant 6.250000e-02 : f32
    %180 = vector.broadcast %cst_69 : f32 to vector<1x128xf32>
    %181 = arith.mulf %179, %180 : vector<1x128xf32>
    %182 = arith.mulf %177, %177 : vector<16x128xf32>
    %cst_70 = arith.constant dense<0.000000e+00> : vector<128xf32>
    %183 = vector.multi_reduction <add>, %182, %cst_70 [0] : vector<16x128xf32> to vector<128xf32>
    %184 = vector.shape_cast %183 : vector<128xf32> to vector<1x128xf32>
    %cst_71 = arith.constant 6.250000e-02 : f32
    %185 = vector.broadcast %cst_71 : f32 to vector<1x128xf32>
    %186 = arith.mulf %184, %185 : vector<1x128xf32>
    %187 = arith.mulf %181, %181 : vector<1x128xf32>
    %188 = arith.subf %186, %187 : vector<1x128xf32>
    %cst_72 = arith.constant 0.000000e+00 : f32
    %189 = vector.broadcast %cst_72 : f32 to vector<1x128xf32>
    %190 = arith.maximumf %188, %189 : vector<1x128xf32>
    %cst_73 = arith.constant 9.99999974E-6 : f32
    %191 = vector.broadcast %cst_73 : f32 to vector<1x128xf32>
    %192 = arith.addf %190, %191 : vector<1x128xf32>
    %193 = math.rsqrt %192 : vector<1x128xf32>
    %194 = arith.mulf %133, %193 : vector<1x128xf32>
    %195 = arith.mulf %181, %194 : vector<1x128xf32>
    %196 = arith.subf %134, %195 : vector<1x128xf32>
    %197 = vector.broadcast %194 : vector<1x128xf32> to vector<16x128xf32>
    %198 = arith.mulf %173, %197 : vector<16x128xf32>
    %199 = vector.broadcast %196 : vector<1x128xf32> to vector<16x128xf32>
    %200 = arith.addf %198, %199 : vector<16x128xf32>
    %201 = vector.broadcast %8 : vector<16x1xf32> to vector<16x128xf32>
    %202 = arith.mulf %200, %201 : vector<16x128xf32>
    %203 = vector.broadcast %13 : vector<16x1xf32> to vector<16x128xf32>
    %204 = arith.mulf %175, %203 : vector<16x128xf32>
    %cst_74 = arith.constant dense<0.000000e+00> : vector<128xf32>
    %205 = vector.multi_reduction <add>, %204, %cst_74 [0] : vector<16x128xf32> to vector<128xf32>
    %206 = vector.shape_cast %205 : vector<128xf32> to vector<1x128xf32>
    %cst_75 = arith.constant 6.250000e-02 : f32
    %207 = vector.broadcast %cst_75 : f32 to vector<1x128xf32>
    %208 = arith.mulf %206, %207 : vector<1x128xf32>
    %209 = arith.mulf %204, %204 : vector<16x128xf32>
    %cst_76 = arith.constant dense<0.000000e+00> : vector<128xf32>
    %210 = vector.multi_reduction <add>, %209, %cst_76 [0] : vector<16x128xf32> to vector<128xf32>
    %211 = vector.shape_cast %210 : vector<128xf32> to vector<1x128xf32>
    %cst_77 = arith.constant 6.250000e-02 : f32
    %212 = vector.broadcast %cst_77 : f32 to vector<1x128xf32>
    %213 = arith.mulf %211, %212 : vector<1x128xf32>
    %214 = arith.mulf %208, %208 : vector<1x128xf32>
    %215 = arith.subf %213, %214 : vector<1x128xf32>
    %cst_78 = arith.constant 0.000000e+00 : f32
    %216 = vector.broadcast %cst_78 : f32 to vector<1x128xf32>
    %217 = arith.maximumf %215, %216 : vector<1x128xf32>
    %cst_79 = arith.constant 9.99999974E-6 : f32
    %218 = vector.broadcast %cst_79 : f32 to vector<1x128xf32>
    %219 = arith.addf %217, %218 : vector<1x128xf32>
    %220 = math.rsqrt %219 : vector<1x128xf32>
    %221 = arith.mulf %133, %220 : vector<1x128xf32>
    %222 = arith.mulf %208, %221 : vector<1x128xf32>
    %223 = arith.subf %134, %222 : vector<1x128xf32>
    %224 = vector.broadcast %221 : vector<1x128xf32> to vector<16x128xf32>
    %225 = arith.mulf %175, %224 : vector<16x128xf32>
    %226 = vector.broadcast %223 : vector<1x128xf32> to vector<16x128xf32>
    %227 = arith.addf %225, %226 : vector<16x128xf32>
    %228 = vector.broadcast %13 : vector<16x1xf32> to vector<16x128xf32>
    %229 = arith.mulf %227, %228 : vector<16x128xf32>
    %c0_80 = arith.constant 0 : index
    %c0_81 = arith.constant 0 : index
    %230 = vector.load %arg8[%c0_80, %c0_81] : memref<32x128xf32, #tpu.memory_space<vmem>>, vector<16x128xf32>
    tpu.vector_store %arg8[%c0_80, %c0_81], %202 {strides = array<i32>} : memref<32x128xf32, #tpu.memory_space<vmem>>, vector<16x128xf32>,
    %c16 = arith.constant 16 : index
    %c0_82 = arith.constant 0 : index
    %231 = vector.load %arg8[%c16, %c0_82] : memref<32x128xf32, #tpu.memory_space<vmem>>, vector<16x128xf32>
    tpu.vector_store %arg8[%c16, %c0_82], %229 {strides = array<i32>} : memref<32x128xf32, #tpu.memory_space<vmem>>, vector<16x128xf32>,
    return
  }
}

</mosaic_0001>

<llo_original>
// kernel: hgnn_forward.1
$region0: #{hgnn_forward.1}
  #allocation0 [shape = 'u32[]', space=smem, size = 0x4, offset = 0x4, fixed_abs, tag = 'smem constant byte address 0x4 - core index']
  #allocation1 [shape = 'u32[72,128]{1,0:T(1,128)}', space=vmem, size = 0x9000, scoped, tag = 'internal scratch']
  %s0 = inlined_call_operand.vmem [shape: f32[16,128], index: 0, kind: input, shape index: {}]
  %s1 = inlined_call_operand.vmem [shape: f32[16,128], index: 1, kind: input, shape index: {}]
  %s2 = inlined_call_operand.vmem [shape: bf16[32,16], index: 2, kind: input, shape index: {}]
  %s3 = inlined_call_operand.vmem [shape: bf16[32,16], index: 3, kind: input, shape index: {}]
  %s4 = inlined_call_operand.vmem [shape: bf16[2,128,128], index: 4, kind: input, shape index: {}]
  %s5 = inlined_call_operand.vmem [shape: bf16[2,128,128], index: 5, kind: input, shape index: {}]
  %s6 = inlined_call_operand.vmem [shape: bf16[2,128,128], index: 6, kind: input, shape index: {}]
  %s7 = inlined_call_operand.vmem [shape: f32[2,8,128], index: 7, kind: input, shape index: {}]
  %s8 = inlined_call_operand.hbm [shape: f32[32,128], index: 8, kind: output, shape index: {}]
  %s9 = sld [smem:[#allocation0]]
  $region42: #{hgnn_forward.1} parent=0
    _
  %s11 = ssub.s32 1, %s9
  %s12 = scalar_select 0, %s11, %s9
  $region1: #{hgnn_forward.1} parent=0
    #allocation2 [shape = 'u8[16384]{0}', space=vmem, size = 0x4000, scoped, tag = 'output window, operand 0, single buffered']
    #allocation3 [shape = 's32[1]{0}', space=sflag, size = 0x4, scoped, tag = 'scoped memory for hgnn_forward.1']
    %13 = vsyncpa [#allocation3], 0
    // Predicated region
    $region2: #{hgnn_forward.1} parent=1 // pred_check
      _
    $region3: #{hgnn_forward.1} parent=1 // pred_check_branch
      %15 = sbr.rel (0) target = $region5
    $region4: #{hgnn_forward.1} parent=1 // pred_region
      _
    $region5: #{hgnn_forward.1} parent=1 // pred_fallthru
      _
    // Predicated region
    $region6: #{hgnn_forward.1} parent=1 // pred_check
      _
    $region7: #{hgnn_forward.1} parent=1 // pred_check_branch
      %17 = sbr.rel (0) target = $region9
    $region8: #{hgnn_forward.1} parent=1 // pred_region
      _
    $region9: #{hgnn_forward.1} parent=1 // pred_fallthru
      _
    // Predicated region
    $region10: #{hgnn_forward.1} parent=1 // pred_check
      _
    $region11: #{hgnn_forward.1} parent=1 // pred_check_branch
      %19 = sbr.rel (0) target = $region13
    $region12: #{hgnn_forward.1} parent=1 // pred_region
      _
    $region13: #{hgnn_forward.1} parent=1 // pred_fallthru
      _
    // Predicated region
    $region14: #{hgnn_forward.1} parent=1 // pred_check
      _
    $region15: #{hgnn_forward.1} parent=1 // pred_check_branch
      %21 = sbr.rel (0) target = $region17
    $region16: #{hgnn_forward.1} parent=1 // pred_region
      _
    $region17: #{hgnn_forward.1} parent=1 // pred_fallthru
      _
    // Predicated region
    $region18: #{hgnn_forward.1} parent=1 // pred_check
      _
    $region19: #{hgnn_forward.1} parent=1 // pred_check_branch
      %23 = sbr.rel (0) target = $region21
    $region20: #{hgnn_forward.1} parent=1 // pred_region
      _
    $region21: #{hgnn_forward.1} parent=1 // pred_fallthru
      _
    // Predicated region
    $region22: #{hgnn_forward.1} parent=1 // pred_check
      _
    $region23: #{hgnn_forward.1} parent=1 // pred_check_branch
      %25 = sbr.rel (0) target = $region25
    $region24: #{hgnn_forward.1} parent=1 // pred_region
      _
    $region25: #{hgnn_forward.1} parent=1 // pred_fallthru
      _
    // Predicated region
    $region26: #{hgnn_forward.1} parent=1 // pred_check
      _
    $region27: #{hgnn_forward.1} parent=1 // pred_check_branch
      %27 = sbr.rel (0) target = $region29
    $region28: #{hgnn_forward.1} parent=1 // pred_region
      _
    $region29: #{hgnn_forward.1} parent=1 // pred_fallthru
      _
    // Predicated region
    $region30: #{hgnn_forward.1} parent=1 // pred_check
      _
    $region31: #{hgnn_forward.1} parent=1 // pred_check_branch
      %29 = sbr.rel (0) target = $region33
    $region32: #{hgnn_forward.1} parent=1 // pred_region
      _
    $region33: #{hgnn_forward.1} parent=1 // pred_fallthru
      _
    %v31 = vld [vmem:[%s2] sm:$0xf]
    %v32 = vld [vmem:[%s2 + $0x4] sm:$0xf]
    %v33 = vld [vmem:[%s2 + $0x8] sm:$0xf]
    %v34 = vld [vmem:[%s2 + $0xc] sm:$0xf]
    %v35 = vld [vmem:[%s3] sm:$0xf]
    %v36 = vld [vmem:[%s3 + $0x4] sm:$0xf]
    %v37 = vld [vmem:[%s3 + $0x8] sm:$0xf]
    %v38 = vld [vmem:[%s3 + $0xc] sm:$0xf]
    %v39 = vld [vmem:[%s0] sm:$0xff]
    %v40 = vld [vmem:[%s0 + $0x8] sm:$0xff]
    %v41 = vld [vmem:[%s1] sm:$0xff]
    %v42 = vld [vmem:[%s1 + $0x8] sm:$0xff]
    %v43 = vlaneseq
    %v44 = vshrl.u32 %v43, 7
    %v45 = vadd.s32 %v44, 8
    %vm46 = vcmp.lt.s32.totalorder %v44, 16
    %vm47 = vcmp.lt.s32.totalorder %v45, 16
    %v48 = vsel %vm46, 1, 0
    %v49 = vsel %vm47, 1, 0
    %v50 = vcvt.s32.f32 %v48
    %v51 = vcvt.s32.f32 %v49
    %v52 = vld [vmem:[%s4] sm:$0xf]
    %v53 = vld [vmem:[%s4 + $0x4] sm:$0xf]
    %v54 = vld [vmem:[%s4 + $0x8] sm:$0xf]
    %v55 = vld [vmem:[%s4 + $0xc] sm:$0xf]
    %v56 = vld [vmem:[%s4 + $0x10] sm:$0xf]
    %v57 = vld [vmem:[%s4 + $0x14] sm:$0xf]
    %v58 = vld [vmem:[%s4 + $0x18] sm:$0xf]
    %v59 = vld [vmem:[%s4 + $0x1c] sm:$0xf]
    %v60 = vld [vmem:[%s4 + $0x20] sm:$0xf]
    %v61 = vld [vmem:[%s4 + $0x24] sm:$0xf]
    %v62 = vld [vmem:[%s4 + $0x28] sm:$0xf]
    %v63 = vld [vmem:[%s4 + $0x2c] sm:$0xf]
    %v64 = vld [vmem:[%s4 + $0x30] sm:$0xf]
    %v65 = vld [vmem:[%s4 + $0x34] sm:$0xf]
    %v66 = vld [vmem:[%s4 + $0x38] sm:$0xf]
    %v67 = vld [vmem:[%s4 + $0x3c] sm:$0xf]
    %v68 = vld [vmem:[%s5] sm:$0xf]
    %v69 = vld [vmem:[%s5 + $0x4] sm:$0xf]
    %v70 = vld [vmem:[%s5 + $0x8] sm:$0xf]
    %v71 = vld [vmem:[%s5 + $0xc] sm:$0xf]
    %v72 = vld [vmem:[%s5 + $0x10] sm:$0xf]
    %v73 = vld [vmem:[%s5 + $0x14] sm:$0xf]
    %v74 = vld [vmem:[%s5 + $0x18] sm:$0xf]
    %v75 = vld [vmem:[%s5 + $0x1c] sm:$0xf]
    %v76 = vld [vmem:[%s5 + $0x20] sm:$0xf]
    %v77 = vld [vmem:[%s5 + $0x24] sm:$0xf]
    %v78 = vld [vmem:[%s5 + $0x28] sm:$0xf]
    %v79 = vld [vmem:[%s5 + $0x2c] sm:$0xf]
    %v80 = vld [vmem:[%s5 + $0x30] sm:$0xf]
    %v81 = vld [vmem:[%s5 + $0x34] sm:$0xf]
    %v82 = vld [vmem:[%s5 + $0x38] sm:$0xf]
    %v83 = vld [vmem:[%s5 + $0x3c] sm:$0xf]
    %v84 = vld [vmem:[%s6] sm:$0xf]
    %v85 = vld [vmem:[%s6 + $0x4] sm:$0xf]
    %v86 = vld [vmem:[%s6 + $0x8] sm:$0xf]
    %v87 = vld [vmem:[%s6 + $0xc] sm:$0xf]
    %v88 = vld [vmem:[%s6 + $0x10] sm:$0xf]
    %v89 = vld [vmem:[%s6 + $0x14] sm:$0xf]
    %v90 = vld [vmem:[%s6 + $0x18] sm:$0xf]
    %v91 = vld [vmem:[%s6 + $0x1c] sm:$0xf]
    %v92 = vld [vmem:[%s6 + $0x20] sm:$0xf]
    %v93 = vld [vmem:[%s6 + $0x24] sm:$0xf]
    %v94 = vld [vmem:[%s6 + $0x28] sm:$0xf]
    %v95 = vld [vmem:[%s6 + $0x2c] sm:$0xf]
    %v96 = vld [vmem:[%s6 + $0x30] sm:$0xf]
    %v97 = vld [vmem:[%s6 + $0x34] sm:$0xf]
    %v98 = vld [vmem:[%s6 + $0x38] sm:$0xf]
    %v99 = vld [vmem:[%s6 + $0x3c] sm:$0xf]
    %v100 = vld [vmem:[%s7] sm:$0xff]
    %v101 = vpack.c.bf16 %v42, %v41
    %v106 = vunpack.c.l.b16 %v31
    %v107 = vunpack.c.l.b16 %v32
    %v108 = vunpack.c.l.b16 %v33
    %v109 = vunpack.c.l.b16 %v34
    %v110 = vpack.c.b16 %v107, %v106
    %v111 = vpack.c.b16 %v109, %v108
    %vm112 = vcmask 130048
    %v114 = vsel %vm112, %v110, 0
    %v117 = vsel %vm112, %v111, 0
    %119 = vmatpush.bf16.msra.mxu0 0
    %120 = vmatpush.bf16.msra.mxu0 0
    %121 = vmatpush.bf16.msra.mxu0 0
    %122 = vmatpush.bf16.msra.mxu0 0
    %123 = vmatpush.bf16.msra.mxu0 0
    %124 = vmatpush.bf16.msra.mxu0 0
    %125 = vmatpush.bf16.msra.mxu0 0
    %126 = vmatpush.bf16.msra.mxu0 %v101
    %127 = vmatmul.bf16.gmra.mxu0 %v114
    %v128 = vpop.f32.mrf.mxu0
    %v129 = vadd.f32 0.0, %v128
    %v130 = vpop.f32.mrf.mxu0
    %v131 = vadd.f32 0.0, %v130
    %132 = vmatmul.bf16.gmra.mxu0 %v117
    %v133 = vpop.f32.mrf.mxu0
    %v134 = vadd.f32 0.0, %v133
    %v135 = vpop.f32.mrf.mxu0
    %v136 = vadd.f32 0.0, %v135
    %137 = vdwg.mxu0
    %v138 = vpack.c.bf16 %v40, %v39
    %v143 = vunpack.c.l.b16 %v35
    %v144 = vunpack.c.l.b16 %v36
    %v145 = vunpack.c.l.b16 %v37
    %v146 = vunpack.c.l.b16 %v38
    %v147 = vpack.c.b16 %v144, %v143
    %v148 = vpack.c.b16 %v146, %v145
    %v150 = vsel %vm112, %v147, 0
    %v153 = vsel %vm112, %v148, 0
    %155 = vmatpush.bf16.msra.mxu0 0
    %156 = vmatpush.bf16.msra.mxu0 0
    %157 = vmatpush.bf16.msra.mxu0 0
    %158 = vmatpush.bf16.msra.mxu0 0
    %159 = vmatpush.bf16.msra.mxu0 0
    %160 = vmatpush.bf16.msra.mxu0 0
    %161 = vmatpush.bf16.msra.mxu0 0
    %162 = vmatpush.bf16.msra.mxu0 %v138
    %163 = vmatmul.bf16.gmra.mxu0 %v150
    %v164 = vpop.f32.mrf.mxu0
    %v165 = vadd.f32 0.0, %v164
    %v166 = vpop.f32.mrf.mxu0
    %v167 = vadd.f32 0.0, %v166
    %168 = vmatmul.bf16.gmra.mxu0 %v153
    %v169 = vpop.f32.mrf.mxu0
    %v170 = vadd.f32 0.0, %v169
    %v171 = vpop.f32.mrf.mxu0
    %v172 = vadd.f32 0.0, %v171
    %173 = vdwg.mxu0
    %v174 = vadd.f32 %v41, %v129
    %v175 = vadd.f32 %v42, %v131
    %v176 = vpack.c.bf16 %v175, %v174
    %v177 = vperm.slane %v100, 0
    %v194 = vunpack.c.l.b16 %v52
    %v195 = vunpack.c.l.b16 %v53
    %v196 = vunpack.c.l.b16 %v54
    %v197 = vunpack.c.l.b16 %v55
    %v198 = vunpack.c.l.b16 %v56
    %v199 = vunpack.c.l.b16 %v57
    %v200 = vunpack.c.l.b16 %v58
    %v201 = vunpack.c.l.b16 %v59
    %v202 = vunpack.c.l.b16 %v60
    %v203 = vunpack.c.l.b16 %v61
    %v204 = vunpack.c.l.b16 %v62
    %v205 = vunpack.c.l.b16 %v63
    %v206 = vunpack.c.l.b16 %v64
    %v207 = vunpack.c.l.b16 %v65
    %v208 = vunpack.c.l.b16 %v66
    %v209 = vunpack.c.l.b16 %v67
    %v210 = vpack.c.b16 %v195, %v194
    %v211 = vpack.c.b16 %v197, %v196
    %v212 = vpack.c.b16 %v199, %v198
    %v213 = vpack.c.b16 %v201, %v200
    %v214 = vpack.c.b16 %v203, %v202
    %v215 = vpack.c.b16 %v205, %v204
    %v216 = vpack.c.b16 %v207, %v206
    %v217 = vpack.c.b16 %v209, %v208
    %226 = vmatpush.bf16.msra.mxu0 %v217
    %227 = vmatpush.bf16.msra.mxu0 %v216
    %228 = vmatpush.bf16.msra.mxu0 %v215
    %229 = vmatpush.bf16.msra.mxu0 %v214
    %230 = vmatpush.bf16.msra.mxu0 %v213
    %231 = vmatpush.bf16.msra.mxu0 %v212
    %232 = vmatpush.bf16.msra.mxu0 %v211
    %233 = vmatpush.bf16.msra.mxu0 %v210
    %234 = vmatmul.bf16.gmra.mxu0 %v176
    %v235 = vpop.f32.mrf.mxu0
    %v236 = vadd.f32 %v177, %v235
    %v237 = vpop.f32.mrf.mxu0
    %v238 = vadd.f32 %v177, %v237
    %239 = vdwg.mxu0
    %v240 = vmax.f32 %v236, 0.0
    %v241 = vmax.f32 %v238, 0.0
    %v242 = vpack.c.bf16 %v241, %v240
    %v243 = vperm.slane %v100, 1
    %v260 = vunpack.c.l.b16 %v68
    %v261 = vunpack.c.l.b16 %v69
    %v262 = vunpack.c.l.b16 %v70
    %v263 = vunpack.c.l.b16 %v71
    %v264 = vunpack.c.l.b16 %v72
    %v265 = vunpack.c.l.b16 %v73
    %v266 = vunpack.c.l.b16 %v74
    %v267 = vunpack.c.l.b16 %v75
    %v268 = vunpack.c.l.b16 %v76
    %v269 = vunpack.c.l.b16 %v77
    %v270 = vunpack.c.l.b16 %v78
    %v271 = vunpack.c.l.b16 %v79
    %v272 = vunpack.c.l.b16 %v80
    %v273 = vunpack.c.l.b16 %v81
    %v274 = vunpack.c.l.b16 %v82
    %v275 = vunpack.c.l.b16 %v83
    %v276 = vpack.c.b16 %v261, %v260
    %v277 = vpack.c.b16 %v263, %v262
    %v278 = vpack.c.b16 %v265, %v264
    %v279 = vpack.c.b16 %v267, %v266
    %v280 = vpack.c.b16 %v269, %v268
    %v281 = vpack.c.b16 %v271, %v270
    %v282 = vpack.c.b16 %v273, %v272
    %v283 = vpack.c.b16 %v275, %v274
    %292 = vmatpush.bf16.msra.mxu0 %v283
    %293 = vmatpush.bf16.msra.mxu0 %v282
    %294 = vmatpush.bf16.msra.mxu0 %v281
    %295 = vmatpush.bf16.msra.mxu0 %v280
    %296 = vmatpush.bf16.msra.mxu0 %v279
    %297 = vmatpush.bf16.msra.mxu0 %v278
    %298 = vmatpush.bf16.msra.mxu0 %v277
    %299 = vmatpush.bf16.msra.mxu0 %v276
    %300 = vmatmul.bf16.gmra.mxu0 %v242
    %v301 = vpop.f32.mrf.mxu0
    %v302 = vadd.f32 %v243, %v301
    %v303 = vpop.f32.mrf.mxu0
    %v304 = vadd.f32 %v243, %v303
    %305 = vdwg.mxu0
    %v306 = vpack.c.bf16 %v167, %v165
    %v307 = vpack.c.bf16 %v172, %v170
    %v308 = vperm.slane %v100, 2
    %v325 = vunpack.c.l.b16 %v84
    %v326 = vunpack.c.l.b16 %v85
    %v327 = vunpack.c.l.b16 %v86
    %v328 = vunpack.c.l.b16 %v87
    %v329 = vunpack.c.l.b16 %v88
    %v330 = vunpack.c.l.b16 %v89
    %v331 = vunpack.c.l.b16 %v90
    %v332 = vunpack.c.l.b16 %v91
    %v333 = vunpack.c.l.b16 %v92
    %v334 = vunpack.c.l.b16 %v93
    %v335 = vunpack.c.l.b16 %v94
    %v336 = vunpack.c.l.b16 %v95
    %v337 = vunpack.c.l.b16 %v96
    %v338 = vunpack.c.l.b16 %v97
    %v339 = vunpack.c.l.b16 %v98
    %v340 = vunpack.c.l.b16 %v99
    %v341 = vpack.c.b16 %v326, %v325
    %v342 = vpack.c.b16 %v328, %v327
    %v343 = vpack.c.b16 %v330, %v329
    %v344 = vpack.c.b16 %v332, %v331
    %v345 = vpack.c.b16 %v334, %v333
    %v346 = vpack.c.b16 %v336, %v335
    %v347 = vpack.c.b16 %v338, %v337
    %v348 = vpack.c.b16 %v340, %v339
    %357 = vmatpush.bf16.msra.mxu0 %v348
    %358 = vmatpush.bf16.msra.mxu0 %v347
    %359 = vmatpush.bf16.msra.mxu0 %v346
    %360 = vmatpush.bf16.msra.mxu0 %v345
    %361 = vmatpush.bf16.msra.mxu0 %v344
    %362 = vmatpush.bf16.msra.mxu0 %v343
    %363 = vmatpush.bf16.msra.mxu0 %v342
    %364 = vmatpush.bf16.msra.mxu0 %v341
    %365 = vmatmul.bf16.gmra.mxu0 %v306
    %v366 = vpop.f32.mrf.mxu0
    %v367 = vadd.f32 %v308, %v366
    %v368 = vpop.f32.mrf.mxu0
    %v369 = vadd.f32 %v308, %v368
    %370 = vmatmul.bf16.gmra.mxu0 %v307
    %v371 = vpop.f32.mrf.mxu0
    %v372 = vadd.f32 %v308, %v371
    %v373 = vpop.f32.mrf.mxu0
    %v374 = vadd.f32 %v308, %v373
    %375 = vdwg.mxu0
    %v376 = vmul.f32 %v367, 0.1
    %v377 = vmul.f32 %v369, 0.1
    %v378 = vmul.f32 %v372, 0.1
    %v379 = vmul.f32 %v374, 0.1
    %v380 = vpack.c.bf16 %v136, %v134
    %381 = vmatpush.bf16.msra.mxu0 %v348
    %382 = vmatpush.bf16.msra.mxu0 %v347
    %383 = vmatpush.bf16.msra.mxu0 %v346
    %384 = vmatpush.bf16.msra.mxu0 %v345
    %385 = vmatpush.bf16.msra.mxu0 %v344
    %386 = vmatpush.bf16.msra.mxu0 %v343
    %387 = vmatpush.bf16.msra.mxu0 %v342
    %388 = vmatpush.bf16.msra.mxu0 %v341
    %389 = vmatmul.bf16.gmra.mxu0 %v380
    %v390 = vpop.f32.mrf.mxu0
    %v391 = vadd.f32 %v308, %v390
    %v392 = vpop.f32.mrf.mxu0
    %v393 = vadd.f32 %v308, %v392
    %394 = vdwg.mxu0
    %v395 = vmul.f32 %v391, 0.1
    %v396 = vmul.f32 %v393, 0.1
    %v397 = vadd.f32 %v302, %v376
    %v398 = vadd.f32 %v304, %v377
    %v399 = vmul.f32 %v397, 0.5
    %v400 = vmul.f32 %v398, 0.5
    %v401 = vadd.f32 %v395, %v378
    %v402 = vadd.f32 %v396, %v379
    %v403 = vmul.f32 %v401, 0.5
    %v404 = vmul.f32 %v402, 0.5
    %v405 = vmax.f32 %v403, 0.0
    %v406 = vmax.f32 %v404, 0.0
    %v407 = vmax.f32 %v399, 0.0
    %v408 = vmax.f32 %v400, 0.0
    %v409 = vmul.f32 %v405, %v50
    %v410 = vmul.f32 %v406, %v51
    %v411 = vadd.f32 %v409, %v410
    %v412 = vrot.slane %v411, 4
    %v413 = vadd.f32 %v411, %v412
    %v414 = vrot.slane %v413, 2
    %v415 = vadd.f32 %v413, %v414
    %v416 = vrot.slane %v415, 1
    %v417 = vadd.f32 %v415, %v416
    %v418 = vmul.f32 %v417, 0.0625
    %v419 = vmul.f32 %v409, %v409
    %v420 = vmul.f32 %v410, %v410
    %v421 = vadd.f32 %v419, %v420
    %v422 = vrot.slane %v421, 4
    %v423 = vadd.f32 %v421, %v422
    %v424 = vrot.slane %v423, 2
    %v425 = vadd.f32 %v423, %v424
    %v426 = vrot.slane %v425, 1
    %v427 = vadd.f32 %v425, %v426
    %v428 = vmul.f32 %v427, 0.0625
    %v429 = vmul.f32 %v418, %v418
    %v430 = vsub.f32 %v428, %v429
    %v431 = vmax.f32 %v430, 0.0
    %v432 = vadd.f32 %v431, 1e-05
    %v433 = vrsqrt.pop %v432
    %v434 = vmul.f32 %v433, %v432
    %v435 = vmul.f32 %v434, %v433
    %v436 = vmul.f32 0.5, %v435
    %v437 = vsub.f32 1.5, %v436
    %v438 = vmul.f32 %v433, %v437
    %vm439 = vweird.f32 %v432
    %vm440 = vweird.f32 %v433
    %vm441 = vmor %vm439, %vm440
    %v442 = vsel %vm441, %v433, %v438
    %v443 = vmul.f32 %v100, %v442
    %v444 = vmul.f32 %v418, %v443
    %v446 = vrot.slane %v444, 7
    %v448 = vsub.f32 %v100, %v446
    %v449 = vperm.slane %v443, 3
    %v450 = vmul.f32 %v405, %v449
    %v451 = vmul.f32 %v406, %v449
    %v452 = vperm.slane %v448, 4
    %v453 = vadd.f32 %v450, %v452
    %v454 = vadd.f32 %v451, %v452
    %v455 = vmul.f32 %v453, %v50
    %v456 = vmul.f32 %v454, %v51
    %v457 = vmul.f32 %v407, %v50
    %v458 = vmul.f32 %v408, %v51
    %v459 = vadd.f32 %v457, %v458
    %v460 = vrot.slane %v459, 4
    %v461 = vadd.f32 %v459, %v460
    %v462 = vrot.slane %v461, 2
    %v463 = vadd.f32 %v461, %v462
    %v464 = vrot.slane %v463, 1
    %v465 = vadd.f32 %v463, %v464
    %v466 = vmul.f32 %v465, 0.0625
    %v467 = vmul.f32 %v457, %v457
    %v468 = vmul.f32 %v458, %v458
    %v469 = vadd.f32 %v467, %v468
    %v470 = vrot.slane %v469, 4
    %v471 = vadd.f32 %v469, %v470
    %v472 = vrot.slane %v471, 2
    %v473 = vadd.f32 %v471, %v472
    %v474 = vrot.slane %v473, 1
    %v475 = vadd.f32 %v473, %v474
    %v476 = vmul.f32 %v475, 0.0625
    %v477 = vmul.f32 %v466, %v466
    %v478 = vsub.f32 %v476, %v477
    %v479 = vmax.f32 %v478, 0.0
    %v480 = vadd.f32 %v479, 1e-05
    %v481 = vrsqrt.pop %v480
    %v482 = vmul.f32 %v481, %v480
    %v483 = vmul.f32 %v482, %v481
    %v484 = vmul.f32 0.5, %v483
    %v485 = vsub.f32 1.5, %v484
    %v486 = vmul.f32 %v481, %v485
    %vm487 = vweird.f32 %v480
    %vm488 = vweird.f32 %v481
    %vm489 = vmor %vm487, %vm488
    %v490 = vsel %vm489, %v481, %v486
    %v491 = vmul.f32 %v100, %v490
    %v492 = vmul.f32 %v466, %v491
    %v494 = vrot.slane %v492, 7
    %v496 = vsub.f32 %v100, %v494
    %v497 = vperm.slane %v491, 3
    %v498 = vmul.f32 %v407, %v497
    %v499 = vmul.f32 %v408, %v497
    %v500 = vperm.slane %v496, 4
    %v501 = vadd.f32 %v498, %v500
    %v502 = vadd.f32 %v499, %v500
    %v503 = vmul.f32 %v501, %v50
    %v504 = vmul.f32 %v502, %v51
    %s505 = scalar_lea.vmem %s4, 64
    %v506 = vld [vmem:[%s505] sm:$0xf]
    %v507 = vld [vmem:[%s505 + $0x4] sm:$0xf]
    %v508 = vld [vmem:[%s505 + $0x8] sm:$0xf]
    %v509 = vld [vmem:[%s505 + $0xc] sm:$0xf]
    %v510 = vld [vmem:[%s505 + $0x10] sm:$0xf]
    %v511 = vld [vmem:[%s505 + $0x14] sm:$0xf]
    %v512 = vld [vmem:[%s505 + $0x18] sm:$0xf]
    %v513 = vld [vmem:[%s505 + $0x1c] sm:$0xf]
    %v514 = vld [vmem:[%s505 + $0x20] sm:$0xf]
    %v515 = vld [vmem:[%s505 + $0x24] sm:$0xf]
    %v516 = vld [vmem:[%s505 + $0x28] sm:$0xf]
    %v517 = vld [vmem:[%s505 + $0x2c] sm:$0xf]
    %v518 = vld [vmem:[%s505 + $0x30] sm:$0xf]
    %v519 = vld [vmem:[%s505 + $0x34] sm:$0xf]
    %v520 = vld [vmem:[%s505 + $0x38] sm:$0xf]
    %v521 = vld [vmem:[%s505 + $0x3c] sm:$0xf]
    %s522 = scalar_lea.vmem %s5, 64
    %v523 = vld [vmem:[%s522] sm:$0xf]
    %v524 = vld [vmem:[%s522 + $0x4] sm:$0xf]
    %v525 = vld [vmem:[%s522 + $0x8] sm:$0xf]
    %v526 = vld [vmem:[%s522 + $0xc] sm:$0xf]
    %v527 = vld [vmem:[%s522 + $0x10] sm:$0xf]
    %v528 = vld [vmem:[%s522 + $0x14] sm:$0xf]
    %v529 = vld [vmem:[%s522 + $0x18] sm:$0xf]
    %v530 = vld [vmem:[%s522 + $0x1c] sm:$0xf]
    %v531 = vld [vmem:[%s522 + $0x20] sm:$0xf]
    %v532 = vld [vmem:[%s522 + $0x24] sm:$0xf]
    %v533 = vld [vmem:[%s522 + $0x28] sm:$0xf]
    %v534 = vld [vmem:[%s522 + $0x2c] sm:$0xf]
    %v535 = vld [vmem:[%s522 + $0x30] sm:$0xf]
    %v536 = vld [vmem:[%s522 + $0x34] sm:$0xf]
    %v537 = vld [vmem:[%s522 + $0x38] sm:$0xf]
    %v538 = vld [vmem:[%s522 + $0x3c] sm:$0xf]
    %s539 = scalar_lea.vmem %s6, 64
    %v540 = vld [vmem:[%s539] sm:$0xf]
    %v541 = vld [vmem:[%s539 + $0x4] sm:$0xf]
    %v542 = vld [vmem:[%s539 + $0x8] sm:$0xf]
    %v543 = vld [vmem:[%s539 + $0xc] sm:$0xf]
    %v544 = vld [vmem:[%s539 + $0x10] sm:$0xf]
    %v545 = vld [vmem:[%s539 + $0x14] sm:$0xf]
    %v546 = vld [vmem:[%s539 + $0x18] sm:$0xf]
    %v547 = vld [vmem:[%s539 + $0x1c] sm:$0xf]
    %v548 = vld [vmem:[%s539 + $0x20] sm:$0xf]
    %v549 = vld [vmem:[%s539 + $0x24] sm:$0xf]
    %v550 = vld [vmem:[%s539 + $0x28] sm:$0xf]
    %v551 = vld [vmem:[%s539 + $0x2c] sm:$0xf]
    %v552 = vld [vmem:[%s539 + $0x30] sm:$0xf]
    %v553 = vld [vmem:[%s539 + $0x34] sm:$0xf]
    %v554 = vld [vmem:[%s539 + $0x38] sm:$0xf]
    %v555 = vld [vmem:[%s539 + $0x3c] sm:$0xf]
    %s556 = scalar_lea.vmem %s7, 8
    %v557 = vld [vmem:[%s556] sm:$0xff]
    %v558 = vpack.c.bf16 %v504, %v503
    %559 = vmatpush.bf16.msra.mxu0 0
    %560 = vmatpush.bf16.msra.mxu0 0
    %561 = vmatpush.bf16.msra.mxu0 0
    %562 = vmatpush.bf16.msra.mxu0 0
    %563 = vmatpush.bf16.msra.mxu0 0
    %564 = vmatpush.bf16.msra.mxu0 0
    %565 = vmatpush.bf16.msra.mxu0 0
    %566 = vmatpush.bf16.msra.mxu0 %v558
    %567 = vmatmul.bf16.gmra.mxu0 %v114
    %v568 = vpop.f32.mrf.mxu0
    %v569 = vadd.f32 0.0, %v568
    %v570 = vpop.f32.mrf.mxu0
    %v571 = vadd.f32 0.0, %v570
    %572 = vmatmul.bf16.gmra.mxu0 %v117
    %v573 = vpop.f32.mrf.mxu0
    %v574 = vadd.f32 0.0, %v573
    %v575 = vpop.f32.mrf.mxu0
    %v576 = vadd.f32 0.0, %v575
    %577 = vdwg.mxu0
    %v578 = vpack.c.bf16 %v456, %v455
    %579 = vmatpush.bf16.msra.mxu0 0
    %580 = vmatpush.bf16.msra.mxu0 0
    %581 = vmatpush.bf16.msra.mxu0 0
    %582 = vmatpush.bf16.msra.mxu0 0
    %583 = vmatpush.bf16.msra.mxu0 0
    %584 = vmatpush.bf16.msra.mxu0 0
    %585 = vmatpush.bf16.msra.mxu0 0
    %586 = vmatpush.bf16.msra.mxu0 %v578
    %587 = vmatmul.bf16.gmra.mxu0 %v150
    %v588 = vpop.f32.mrf.mxu0
    %v589 = vadd.f32 0.0, %v588
    %v590 = vpop.f32.mrf.mxu0
    %v591 = vadd.f32 0.0, %v590
    %592 = vmatmul.bf16.gmra.mxu0 %v153
    %v593 = vpop.f32.mrf.mxu0
    %v594 = vadd.f32 0.0, %v593
    %v595 = vpop.f32.mrf.mxu0
    %v596 = vadd.f32 0.0, %v595
    %597 = vdwg.mxu0
    %v598 = vadd.f32 %v503, %v569
    %v599 = vadd.f32 %v504, %v571
    %v600 = vpack.c.bf16 %v599, %v598
    %v601 = vperm.slane %v557, 0
    %v618 = vunpack.c.l.b16 %v506
    %v619 = vunpack.c.l.b16 %v507
    %v620 = vunpack.c.l.b16 %v508
    %v621 = vunpack.c.l.b16 %v509
    %v622 = vunpack.c.l.b16 %v510
    %v623 = vunpack.c.l.b16 %v511
    %v624 = vunpack.c.l.b16 %v512
    %v625 = vunpack.c.l.b16 %v513
    %v626 = vunpack.c.l.b16 %v514
    %v627 = vunpack.c.l.b16 %v515
    %v628 = vunpack.c.l.b16 %v516
    %v629 = vunpack.c.l.b16 %v517
    %v630 = vunpack.c.l.b16 %v518
    %v631 = vunpack.c.l.b16 %v519
    %v632 = vunpack.c.l.b16 %v520
    %v633 = vunpack.c.l.b16 %v521
    %v634 = vpack.c.b16 %v619, %v618
    %v635 = vpack.c.b16 %v621, %v620
    %v636 = vpack.c.b16 %v623, %v622
    %v637 = vpack.c.b16 %v625, %v624
    %v638 = vpack.c.b16 %v627, %v626
    %v639 = vpack.c.b16 %v629, %v628
    %v640 = vpack.c.b16 %v631, %v630
    %v641 = vpack.c.b16 %v633, %v632
    %650 = vmatpush.bf16.msra.mxu0 %v641
    %651 = vmatpush.bf16.msra.mxu0 %v640
    %652 = vmatpush.bf16.msra.mxu0 %v639
    %653 = vmatpush.bf16.msra.mxu0 %v638
    %654 = vmatpush.bf16.msra.mxu0 %v637
    %655 = vmatpush.bf16.msra.mxu0 %v636
    %656 = vmatpush.bf16.msra.mxu0 %v635
    %657 = vmatpush.bf16.msra.mxu0 %v634
    %658 = vmatmul.bf16.gmra.mxu0 %v600
    %v659 = vpop.f32.mrf.mxu0
    %v660 = vadd.f32 %v601, %v659
    %v661 = vpop.f32.mrf.mxu0
    %v662 = vadd.f32 %v601, %v661
    %663 = vdwg.mxu0
    %v664 = vmax.f32 %v660, 0.0
    %v665 = vmax.f32 %v662, 0.0
    %v666 = vpack.c.bf16 %v665, %v664
    %v667 = vperm.slane %v557, 1
    %v684 = vunpack.c.l.b16 %v523
    %v685 = vunpack.c.l.b16 %v524
    %v686 = vunpack.c.l.b16 %v525
    %v687 = vunpack.c.l.b16 %v526
    %v688 = vunpack.c.l.b16 %v527
    %v689 = vunpack.c.l.b16 %v528
    %v690 = vunpack.c.l.b16 %v529
    %v691 = vunpack.c.l.b16 %v530
    %v692 = vunpack.c.l.b16 %v531
    %v693 = vunpack.c.l.b16 %v532
    %v694 = vunpack.c.l.b16 %v533
    %v695 = vunpack.c.l.b16 %v534
    %v696 = vunpack.c.l.b16 %v535
    %v697 = vunpack.c.l.b16 %v536
    %v698 = vunpack.c.l.b16 %v537
    %v699 = vunpack.c.l.b16 %v538
    %v700 = vpack.c.b16 %v685, %v684
    %v701 = vpack.c.b16 %v687, %v686
    %v702 = vpack.c.b16 %v689, %v688
    %v703 = vpack.c.b16 %v691, %v690
    %v704 = vpack.c.b16 %v693, %v692
    %v705 = vpack.c.b16 %v695, %v694
    %v706 = vpack.c.b16 %v697, %v696
    %v707 = vpack.c.b16 %v699, %v698
    %716 = vmatpush.bf16.msra.mxu0 %v707
    %717 = vmatpush.bf16.msra.mxu0 %v706
    %718 = vmatpush.bf16.msra.mxu0 %v705
    %719 = vmatpush.bf16.msra.mxu0 %v704
    %720 = vmatpush.bf16.msra.mxu0 %v703
    %721 = vmatpush.bf16.msra.mxu0 %v702
    %722 = vmatpush.bf16.msra.mxu0 %v701
    %723 = vmatpush.bf16.msra.mxu0 %v700
    %724 = vmatmul.bf16.gmra.mxu0 %v666
    %v725 = vpop.f32.mrf.mxu0
    %v726 = vadd.f32 %v667, %v725
    %v727 = vpop.f32.mrf.mxu0
    %v728 = vadd.f32 %v667, %v727
    %729 = vdwg.mxu0
    %v730 = vpack.c.bf16 %v591, %v589
    %v731 = vpack.c.bf16 %v596, %v594
    %v732 = vperm.slane %v557, 2
    %v749 = vunpack.c.l.b16 %v540
    %v750 = vunpack.c.l.b16 %v541
    %v751 = vunpack.c.l.b16 %v542
    %v752 = vunpack.c.l.b16 %v543
    %v753 = vunpack.c.l.b16 %v544
    %v754 = vunpack.c.l.b16 %v545
    %v755 = vunpack.c.l.b16 %v546
    %v756 = vunpack.c.l.b16 %v547
    %v757 = vunpack.c.l.b16 %v548
    %v758 = vunpack.c.l.b16 %v549
    %v759 = vunpack.c.l.b16 %v550
    %v760 = vunpack.c.l.b16 %v551
    %v761 = vunpack.c.l.b16 %v552
    %v762 = vunpack.c.l.b16 %v553
    %v763 = vunpack.c.l.b16 %v554
    %v764 = vunpack.c.l.b16 %v555
    %v765 = vpack.c.b16 %v750, %v749
    %v766 = vpack.c.b16 %v752, %v751
    %v767 = vpack.c.b16 %v754, %v753
    %v768 = vpack.c.b16 %v756, %v755
    %v769 = vpack.c.b16 %v758, %v757
    %v770 = vpack.c.b16 %v760, %v759
    %v771 = vpack.c.b16 %v762, %v761
    %v772 = vpack.c.b16 %v764, %v763
    %781 = vmatpush.bf16.msra.mxu0 %v772
    %782 = vmatpush.bf16.msra.mxu0 %v771
    %783 = vmatpush.bf16.msra.mxu0 %v770
    %784 = vmatpush.bf16.msra.mxu0 %v769
    %785 = vmatpush.bf16.msra.mxu0 %v768
    %786 = vmatpush.bf16.msra.mxu0 %v767
    %787 = vmatpush.bf16.msra.mxu0 %v766
    %788 = vmatpush.bf16.msra.mxu0 %v765
    %789 = vmatmul.bf16.gmra.mxu0 %v730
    %v790 = vpop.f32.mrf.mxu0
    %v791 = vadd.f32 %v732, %v790
    %v792 = vpop.f32.mrf.mxu0
    %v793 = vadd.f32 %v732, %v792
    %794 = vmatmul.bf16.gmra.mxu0 %v731
    %v795 = vpop.f32.mrf.mxu0
    %v796 = vadd.f32 %v732, %v795
    %v797 = vpop.f32.mrf.mxu0
    %v798 = vadd.f32 %v732, %v797
    %799 = vdwg.mxu0
    %v800 = vmul.f32 %v791, 0.1
    %v801 = vmul.f32 %v793, 0.1
    %v802 = vmul.f32 %v796, 0.1
    %v803 = vmul.f32 %v798, 0.1
    %v804 = vpack.c.bf16 %v576, %v574
    %805 = vmatpush.bf16.msra.mxu0 %v772
    %806 = vmatpush.bf16.msra.mxu0 %v771
    %807 = vmatpush.bf16.msra.mxu0 %v770
    %808 = vmatpush.bf16.msra.mxu0 %v769
    %809 = vmatpush.bf16.msra.mxu0 %v768
    %810 = vmatpush.bf16.msra.mxu0 %v767
    %811 = vmatpush.bf16.msra.mxu0 %v766
    %812 = vmatpush.bf16.msra.mxu0 %v765
    %813 = vmatmul.bf16.gmra.mxu0 %v804
    %v814 = vpop.f32.mrf.mxu0
    %v815 = vadd.f32 %v732, %v814
    %v816 = vpop.f32.mrf.mxu0
    %v817 = vadd.f32 %v732, %v816
    %818 = vdwg.mxu0
    %v819 = vmul.f32 %v815, 0.1
    %v820 = vmul.f32 %v817, 0.1
    %v821 = vadd.f32 %v726, %v800
    %v822 = vadd.f32 %v728, %v801
    %v823 = vmul.f32 %v821, 0.5
    %v824 = vmul.f32 %v822, 0.5
    %v825 = vadd.f32 %v819, %v802
    %v826 = vadd.f32 %v820, %v803
    %v827 = vmul.f32 %v825, 0.5
    %v828 = vmul.f32 %v826, 0.5
    %v829 = vmax.f32 %v827, 0.0
    %v830 = vmax.f32 %v828, 0.0
    %v831 = vmax.f32 %v823, 0.0
    %v832 = vmax.f32 %v824, 0.0
    %v833 = vmul.f32 %v829, %v50
    %v834 = vmul.f32 %v830, %v51
    %v835 = vadd.f32 %v833, %v834
    %v836 = vrot.slane %v835, 4
    %v837 = vadd.f32 %v835, %v836
    %v838 = vrot.slane %v837, 2
    %v839 = vadd.f32 %v837, %v838
    %v840 = vrot.slane %v839, 1
    %v841 = vadd.f32 %v839, %v840
    %v842 = vmul.f32 %v841, 0.0625
    %v843 = vmul.f32 %v833, %v833
    %v844 = vmul.f32 %v834, %v834
    %v845 = vadd.f32 %v843, %v844
    %v846 = vrot.slane %v845, 4
    %v847 = vadd.f32 %v845, %v846
    %v848 = vrot.slane %v847, 2
    %v849 = vadd.f32 %v847, %v848
    %v850 = vrot.slane %v849, 1
    %v851 = vadd.f32 %v849, %v850
    %v852 = vmul.f32 %v851, 0.0625
    %v853 = vmul.f32 %v842, %v842
    %v854 = vsub.f32 %v852, %v853
    %v855 = vmax.f32 %v854, 0.0
    %v856 = vadd.f32 %v855, 1e-05
    %v857 = vrsqrt.pop %v856
    %v858 = vmul.f32 %v857, %v856
    %v859 = vmul.f32 %v858, %v857
    %v860 = vmul.f32 0.5, %v859
    %v861 = vsub.f32 1.5, %v860
    %v862 = vmul.f32 %v857, %v861
    %vm863 = vweird.f32 %v856
    %vm864 = vweird.f32 %v857
    %vm865 = vmor %vm863, %vm864
    %v866 = vsel %vm865, %v857, %v862
    %v867 = vmul.f32 %v557, %v866
    %v868 = vmul.f32 %v842, %v867
    %v870 = vrot.slane %v868, 7
    %v872 = vsub.f32 %v557, %v870
    %v873 = vperm.slane %v867, 3
    %v874 = vmul.f32 %v829, %v873
    %v875 = vmul.f32 %v830, %v873
    %v876 = vperm.slane %v872, 4
    %v877 = vadd.f32 %v874, %v876
    %v878 = vadd.f32 %v875, %v876
    %v879 = vmul.f32 %v877, %v50
    %v880 = vmul.f32 %v878, %v51
    %v881 = vmul.f32 %v831, %v50
    %v882 = vmul.f32 %v832, %v51
    %v883 = vadd.f32 %v881, %v882
    %v884 = vrot.slane %v883, 4
    %v885 = vadd.f32 %v883, %v884
    %v886 = vrot.slane %v885, 2
    %v887 = vadd.f32 %v885, %v886
    %v888 = vrot.slane %v887, 1
    %v889 = vadd.f32 %v887, %v888
    %v890 = vmul.f32 %v889, 0.0625
    %v891 = vmul.f32 %v881, %v881
    %v892 = vmul.f32 %v882, %v882
    %v893 = vadd.f32 %v891, %v892
    %v894 = vrot.slane %v893, 4
    %v895 = vadd.f32 %v893, %v894
    %v896 = vrot.slane %v895, 2
    %v897 = vadd.f32 %v895, %v896
    %v898 = vrot.slane %v897, 1
    %v899 = vadd.f32 %v897, %v898
    %v900 = vmul.f32 %v899, 0.0625
    %v901 = vmul.f32 %v890, %v890
    %v902 = vsub.f32 %v900, %v901
    %v903 = vmax.f32 %v902, 0.0
    %v904 = vadd.f32 %v903, 1e-05
    %v905 = vrsqrt.pop %v904
    %v906 = vmul.f32 %v905, %v904
    %v907 = vmul.f32 %v906, %v905
    %v908 = vmul.f32 0.5, %v907
    %v909 = vsub.f32 1.5, %v908
    %v910 = vmul.f32 %v905, %v909
    %vm911 = vweird.f32 %v904
    %vm912 = vweird.f32 %v905
    %vm913 = vmor %vm911, %vm912
    %v914 = vsel %vm913, %v905, %v910
    %v915 = vmul.f32 %v557, %v914
    %v916 = vmul.f32 %v890, %v915
    %v918 = vrot.slane %v916, 7
    %v920 = vsub.f32 %v557, %v918
    %v921 = vperm.slane %v915, 3
    %v922 = vmul.f32 %v831, %v921
    %v923 = vmul.f32 %v832, %v921
    %v924 = vperm.slane %v920, 4
    %v925 = vadd.f32 %v922, %v924
    %v926 = vadd.f32 %v923, %v924
    %v927 = vmul.f32 %v925, %v50
    %v928 = vmul.f32 %v926, %v51
    %929 = vst [vmem:[#allocation2] sm:$0xff] %v879
    %930 = vst [vmem:[#allocation2 + $0x8] sm:$0xff] %v880
    %931 = vst [vmem:[#allocation2 + $0x10] sm:$0xff] %v927
    %932 = vst [vmem:[#allocation2 + $0x18] sm:$0xff] %v928
    // Predicated region
    $region34: #{hgnn_forward.1} parent=1 // pred_check
      _
    $region35: #{hgnn_forward.1} parent=1 // pred_check_branch
      %934 = sbr.rel (0) target = $region37
    $region36: #{hgnn_forward.1} parent=1 // pred_region
      %936 = vsyncadd [#allocation3], 0
      %s937 = sshll.u32 [#allocation2], 4
      %s938 = int_to_ptr.vmem [resolvable:$true] %s937
      %s939 = sshll.u32 %s8, 4
      %s940 = int_to_ptr.hbm [resolvable:$true] %s939
      %945 = dma.vmem_to_hbm [thread:$0]  %s938, 512, %s940, [#allocation3], 128, 128, 8
    $region37: #{hgnn_forward.1} parent=1 // pred_fallthru
      _
    // Predicated region
    $region38: #{hgnn_forward.1} parent=1 // pred_check
      _
    $region39: #{hgnn_forward.1} parent=1 // pred_check_branch
      %947 = sbr.rel (0) target = $region41
    $region40: #{hgnn_forward.1} parent=1 // pred_region
      %949 = dma.done [#allocation3], 512
    $region41: #{hgnn_forward.1} parent=1 // pred_fallthru
      _
    %950 = vsyncpa [#allocation3], 1

</llo_original>
